<compile_context>
chip_gen: v7x
topology: tpu7x:2x2x1
jax: 0.10.0
libtpu: 0.0.40
codegen_flags: <defaults>
</compile_context>

<pallas_src>
import jax
import jax.numpy as jnp
from jax.experimental import pallas as pl
from jax.experimental.pallas import tpu as pltpu


# ----------------------------------------------------------------------------
# Fused kernel: conv1/2/3 (+ReLU) -> mean-pool -> BN(eval) -> fc1(+ReLU)
#               -> fc2 -> log_softmax
# ----------------------------------------------------------------------------
def _mlpnet_kernel(x_ref, w1_ref, b1_ref, w2_ref, b2_ref, w3_ref, b3_ref,
                   pool_ref, bn_scale_ref, bn_shift_ref,
                   fw1_ref, fb1_ref, fw2_ref, fb2_ref, out_ref):
    x = x_ref[...]                                                    # (N, Fin_pad)

    h = jnp.dot(x, w1_ref[...], preferred_element_type=jnp.float32) + b1_ref[...]
    h = jnp.maximum(h, 0.0)                                           # relu(conv1)
    h = jnp.dot(h, w2_ref[...], preferred_element_type=jnp.float32) + b2_ref[...]
    h = jnp.maximum(h, 0.0)                                           # relu(conv2)
    h = jnp.dot(h, w3_ref[...], preferred_element_type=jnp.float32) + b3_ref[...]
    h = jnp.maximum(h, 0.0)                                           # relu(conv3)

    pooled = jnp.dot(pool_ref[...], h,
                     preferred_element_type=jnp.float32)              # (G, 64)

    z = pooled * bn_scale_ref[...] + bn_shift_ref[...]                # BatchNorm1d (eval)

    h1 = jnp.dot(z, fw1_ref[...], preferred_element_type=jnp.float32) + fb1_ref[...]
    h1 = jnp.maximum(h1, 0.0)                                         # relu(fc1)

    logits = jnp.dot(h1, fw2_ref[...],
                     preferred_element_type=jnp.float32) + fb2_ref[...]

    m = jnp.max(logits, axis=1, keepdims=True)
    lse = jnp.log(jnp.sum(jnp.exp(logits - m), axis=1, keepdims=True)) + m
    out_ref[...] = logits - lse                                       # log_softmax(dim=1)


def mlpnet_forward(x, pool, params):
    """x: (N, Fin) node features; pool: (G, N) mean-pool matrix."""
    n, fin = x.shape
    g = pool.shape[0]

    # Pad the degenerate feature dim (Fin=2) to 8 lanes; pad w1 rows with zeros
    # so the matmul is unchanged.
    fin_pad = max(8, fin)
    if fin < fin_pad:
        x = jnp.pad(x, ((0, 0), (0, fin_pad - fin)))
        w1 = jnp.pad(params["w1"], ((0, fin_pad - fin), (0, 0)))
    else:
        w1 = params["w1"]

    d1 = w1.shape[1]            # 64
    d2 = params["w2"].shape[1]  # 64
    d3 = params["w3"].shape[1]  # 64
    h1 = params["fw1"].shape[1]  # 32
    ncls = params["fw2"].shape[1]

    # Advisory cost estimate (flops dominated by the node-level matmuls).
    flops = 2 * (n * fin_pad * d1 + n * d1 * d2 + n * d2 * d3
                 + g * n * d3 + g * d3 * h1 + g * h1 * ncls)
    bytes_acc = 4 * (x.size + w1.size + params["w2"].size + params["w3"].size
                     + pool.size + params["fw1"].size + params["fw2"].size
                     + g * ncls)
    cost = pl.CostEstimate(flops=flops, transcendentals=g * ncls,
                           bytes_accessed=bytes_acc)

    full = lambda shape: pl.BlockSpec(shape, lambda i: (0, 0))
    return pl.pallas_call(
        _mlpnet_kernel,
        out_shape=jax.ShapeDtypeStruct((g, ncls), jnp.float32),
        grid=(1,),
        in_specs=[
            full((n, fin_pad)),
            full((fin_pad, d1)), full((1, d1)),
            full((d1, d2)), full((1, d2)),
            full((d2, d3)), full((1, d3)),
            full((g, n)),
            full((1, d3)), full((1, d3)),
            full((d3, h1)), full((1, h1)),
            full((h1, ncls)), full((1, ncls)),
        ],
        out_specs=full((g, ncls)),
        compiler_params=pltpu.CompilerParams(dimension_semantics=("arbitrary",)),
        cost_estimate=cost,
    )(x, w1, params["b1"], params["w2"], params["b2"], params["w3"], params["b3"],
      pool, params["bn_scale"], params["bn_shift"],
      params["fw1"], params["fb1"], params["fw2"], params["fb2"])


# ----------------------------------------------------------------------------
# Parameter init (deterministic, synthetic)
# ----------------------------------------------------------------------------
def init_params(key, ninp, ncls):
    def nrm(k, shape, scale=0.1):
        return scale * jax.random.normal(k, shape, dtype=jnp.float32)

    keys = jax.random.split(key, 10)
    p = {}
    p["w1"] = nrm(keys[0], (ninp, 64)); p["b1"] = nrm(keys[1], (1, 64))
    p["w2"] = nrm(keys[2], (64, 64));   p["b2"] = nrm(keys[3], (1, 64))
    p["w3"] = nrm(keys[4], (64, 64));   p["b3"] = nrm(keys[5], (1, 64))

    # BatchNorm1d(64), eval mode, default init (gamma=1, beta=0, mean=0, var=1)
    # folded into a per-channel affine.
    eps = 1e-5
    gamma = jnp.ones((1, 64), jnp.float32)
    beta = jnp.zeros((1, 64), jnp.float32)
    rmean = jnp.zeros((1, 64), jnp.float32)
    rvar = jnp.ones((1, 64), jnp.float32)
    scale = gamma / jnp.sqrt(rvar + eps)
    p["bn_scale"] = scale
    p["bn_shift"] = beta - rmean * scale

    p["fw1"] = nrm(keys[6], (64, 32));   p["fb1"] = nrm(keys[7], (1, 32))
    p["fw2"] = nrm(keys[8], (32, ncls)); p["fb2"] = nrm(keys[9], (1, ncls))
    return p


if __name__ == "__main__":
    G, NPG = 2, 64               # 2 graphs x 64 superpixel nodes each
    N = G * NPG
    NINP = 2                     # MNISTSuperpixels intensity + degree (DegreeMaxEigTransform)
    NCLS = 10

    key = jax.random.PRNGKey(0)
    kx, kp = jax.random.split(key, 2)

    x = jax.random.normal(kx, (N, NINP), dtype=jnp.float32)

    # global_mean_pool(x, batch) as a matmul: pool[g, n] = 1/NPG for nodes of graph g.
    pool = jnp.kron(jnp.eye(G, dtype=jnp.float32),
                    jnp.full((1, NPG), 1.0 / NPG, jnp.float32))       # (G, N)

    params = init_params(kp, NINP, NCLS)

    out = mlpnet_forward(x, pool, params)
    out = jax.block_until_ready(out)
    assert out.shape == (G, NCLS)
    assert bool(jnp.all(jnp.isfinite(out)))
    # log_softmax rows must (log-)sum to 1.
    assert bool(jnp.allclose(jnp.sum(jnp.exp(out), axis=1), 1.0, atol=1e-5))
    print("KERNEL_OK")
</pallas_src>

<mosaic_0001>
module attributes {stable_mosaic.version = 11 : i64} {
  func.func @_mlpnet_kernel(%arg0: i32, %arg1: memref<128x8xf32, #tpu.memory_space<vmem>>, %arg2: memref<8x64xf32, #tpu.memory_space<vmem>>, %arg3: memref<1x64xf32, #tpu.memory_space<vmem>>, %arg4: memref<64x64xf32, #tpu.memory_space<vmem>>, %arg5: memref<1x64xf32, #tpu.memory_space<vmem>>, %arg6: memref<64x64xf32, #tpu.memory_space<vmem>>, %arg7: memref<1x64xf32, #tpu.memory_space<vmem>>, %arg8: memref<2x128xf32, #tpu.memory_space<vmem>>, %arg9: memref<1x64xf32, #tpu.memory_space<vmem>>, %arg10: memref<1x64xf32, #tpu.memory_space<vmem>>, %arg11: memref<64x32xf32, #tpu.memory_space<vmem>>, %arg12: memref<1x32xf32, #tpu.memory_space<vmem>>, %arg13: memref<32x10xf32, #tpu.memory_space<vmem>>, %arg14: memref<1x10xf32, #tpu.memory_space<vmem>>, %arg15: memref<2x10xf32, #tpu.memory_space<vmem>>) attributes {dimension_semantics = [#tpu.dimension_semantics<arbitrary>], iteration_bounds = array<i64: 1>, scalar_prefetch = 0 : i64, scratch_operands = 0 : i64, tpu.core_type = #tpu.core_type<tc>, window_params = [{pipeline_mode = #tpu.pipeline_mode<synchronous>, transform_indices = @transform_0, window_bounds = array<i64: 128, 8>}, {pipeline_mode = #tpu.pipeline_mode<synchronous>, transform_indices = @transform_1, window_bounds = array<i64: 8, 64>}, {pipeline_mode = #tpu.pipeline_mode<synchronous>, transform_indices = @transform_2, window_bounds = array<i64: 1, 64>}, {pipeline_mode = #tpu.pipeline_mode<synchronous>, transform_indices = @transform_3, window_bounds = array<i64: 64, 64>}, {pipeline_mode = #tpu.pipeline_mode<synchronous>, transform_indices = @transform_4, window_bounds = array<i64: 1, 64>}, {pipeline_mode = #tpu.pipeline_mode<synchronous>, transform_indices = @transform_5, window_bounds = array<i64: 64, 64>}, {pipeline_mode = #tpu.pipeline_mode<synchronous>, transform_indices = @transform_6, window_bounds = array<i64: 1, 64>}, {pipeline_mode = #tpu.pipeline_mode<synchronous>, transform_indices = @transform_7, window_bounds = array<i64: 2, 128>}, {pipeline_mode = #tpu.pipeline_mode<synchronous>, transform_indices = @transform_8, window_bounds = array<i64: 1, 64>}, {pipeline_mode = #tpu.pipeline_mode<synchronous>, transform_indices = @transform_9, window_bounds = array<i64: 1, 64>}, {pipeline_mode = #tpu.pipeline_mode<synchronous>, transform_indices = @transform_10, window_bounds = array<i64: 64, 32>}, {pipeline_mode = #tpu.pipeline_mode<synchronous>, transform_indices = @transform_11, window_bounds = array<i64: 1, 32>}, {pipeline_mode = #tpu.pipeline_mode<synchronous>, transform_indices = @transform_12, window_bounds = array<i64: 32, 10>}, {pipeline_mode = #tpu.pipeline_mode<synchronous>, transform_indices = @transform_13, window_bounds = array<i64: 1, 10>}, {pipeline_mode = #tpu.pipeline_mode<synchronous>, transform_indices = @transform_14, window_bounds = array<i64: 2, 10>}]} {
    %c0 = arith.constant 0 : index
    %c0_0 = arith.constant 0 : index
    %0 = vector.load %arg1[%c0, %c0_0] : memref<128x8xf32, #tpu.memory_space<vmem>>, vector<128x8xf32>
    %c0_1 = arith.constant 0 : index
    %c0_2 = arith.constant 0 : index
    %1 = vector.load %arg2[%c0_1, %c0_2] : memref<8x64xf32, #tpu.memory_space<vmem>>, vector<8x64xf32>
    %cst = arith.constant dense<0.000000e+00> : vector<128x64xf32>
    %2 = tpu.matmul %0, %1, %cst {dimension_numbers = #tpu.dot_dimension_numbers<[1], [0], [0], [1], [0, 0, 1, 1], [], []>} : vector<128x8xf32>, vector<8x64xf32>, vector<128x64xf32> -> vector<128x64xf32>
    %c0_3 = arith.constant 0 : index
    %c0_4 = arith.constant 0 : index
    %3 = vector.load %arg3[%c0_3, %c0_4] : memref<1x64xf32, #tpu.memory_space<vmem>>, vector<1x64xf32>
    %4 = vector.broadcast %3 : vector<1x64xf32> to vector<128x64xf32>
    %5 = arith.addf %2, %4 : vector<128x64xf32>
    %cst_5 = arith.constant 0.000000e+00 : f32
    %6 = vector.broadcast %cst_5 : f32 to vector<128x64xf32>
    %7 = arith.maximumf %5, %6 : vector<128x64xf32>
    %c0_6 = arith.constant 0 : index
    %c0_7 = arith.constant 0 : index
    %8 = vector.load %arg4[%c0_6, %c0_7] : memref<64x64xf32, #tpu.memory_space<vmem>>, vector<64x64xf32>
    %cst_8 = arith.constant dense<0.000000e+00> : vector<128x64xf32>
    %9 = tpu.matmul %7, %8, %cst_8 {dimension_numbers = #tpu.dot_dimension_numbers<[1], [0], [0], [1], [0, 0, 1, 1], [], []>} : vector<128x64xf32>, vector<64x64xf32>, vector<128x64xf32> -> vector<128x64xf32>
    %c0_9 = arith.constant 0 : index
    %c0_10 = arith.constant 0 : index
    %10 = vector.load %arg5[%c0_9, %c0_10] : memref<1x64xf32, #tpu.memory_space<vmem>>, vector<1x64xf32>
    %11 = vector.broadcast %10 : vector<1x64xf32> to vector<128x64xf32>
    %12 = arith.addf %9, %11 : vector<128x64xf32>
    %cst_11 = arith.constant 0.000000e+00 : f32
    %13 = vector.broadcast %cst_11 : f32 to vector<128x64xf32>
    %14 = arith.maximumf %12, %13 : vector<128x64xf32>
    %c0_12 = arith.constant 0 : index
    %c0_13 = arith.constant 0 : index
    %15 = vector.load %arg6[%c0_12, %c0_13] : memref<64x64xf32, #tpu.memory_space<vmem>>, vector<64x64xf32>
    %cst_14 = arith.constant dense<0.000000e+00> : vector<128x64xf32>
    %16 = tpu.matmul %14, %15, %cst_14 {dimension_numbers = #tpu.dot_dimension_numbers<[1], [0], [0], [1], [0, 0, 1, 1], [], []>} : vector<128x64xf32>, vector<64x64xf32>, vector<128x64xf32> -> vector<128x64xf32>
    %c0_15 = arith.constant 0 : index
    %c0_16 = arith.constant 0 : index
    %17 = vector.load %arg7[%c0_15, %c0_16] : memref<1x64xf32, #tpu.memory_space<vmem>>, vector<1x64xf32>
    %18 = vector.broadcast %17 : vector<1x64xf32> to vector<128x64xf32>
    %19 = arith.addf %16, %18 : vector<128x64xf32>
    %cst_17 = arith.constant 0.000000e+00 : f32
    %20 = vector.broadcast %cst_17 : f32 to vector<128x64xf32>
    %21 = arith.maximumf %19, %20 : vector<128x64xf32>
    %c0_18 = arith.constant 0 : index
    %c0_19 = arith.constant 0 : index
    %22 = vector.load %arg8[%c0_18, %c0_19] : memref<2x128xf32, #tpu.memory_space<vmem>>, vector<2x128xf32>
    %cst_20 = arith.constant dense<0.000000e+00> : vector<2x64xf32>
    %23 = tpu.matmul %22, %21, %cst_20 {dimension_numbers = #tpu.dot_dimension_numbers<[1], [0], [0], [1], [0, 0, 1, 1], [], []>} : vector<2x128xf32>, vector<128x64xf32>, vector<2x64xf32> -> vector<2x64xf32>
    %c0_21 = arith.constant 0 : index
    %c0_22 = arith.constant 0 : index
    %24 = vector.load %arg9[%c0_21, %c0_22] : memref<1x64xf32, #tpu.memory_space<vmem>>, vector<1x64xf32>
    %25 = vector.broadcast %24 : vector<1x64xf32> to vector<2x64xf32>
    %26 = arith.mulf %23, %25 : vector<2x64xf32>
    %c0_23 = arith.constant 0 : index
    %c0_24 = arith.constant 0 : index
    %27 = vector.load %arg10[%c0_23, %c0_24] : memref<1x64xf32, #tpu.memory_space<vmem>>, vector<1x64xf32>
    %28 = vector.broadcast %27 : vector<1x64xf32> to vector<2x64xf32>
    %29 = arith.addf %26, %28 : vector<2x64xf32>
    %c0_25 = arith.constant 0 : index
    %c0_26 = arith.constant 0 : index
    %30 = vector.load %arg11[%c0_25, %c0_26] : memref<64x32xf32, #tpu.memory_space<vmem>>, vector<64x32xf32>
    %cst_27 = arith.constant dense<0.000000e+00> : vector<2x32xf32>
    %31 = tpu.matmul %29, %30, %cst_27 {dimension_numbers = #tpu.dot_dimension_numbers<[1], [0], [0], [1], [0, 0, 1, 1], [], []>} : vector<2x64xf32>, vector<64x32xf32>, vector<2x32xf32> -> vector<2x32xf32>
    %c0_28 = arith.constant 0 : index
    %c0_29 = arith.constant 0 : index
    %32 = vector.load %arg12[%c0_28, %c0_29] : memref<1x32xf32, #tpu.memory_space<vmem>>, vector<1x32xf32>
    %33 = vector.broadcast %32 : vector<1x32xf32> to vector<2x32xf32>
    %34 = arith.addf %31, %33 : vector<2x32xf32>
    %cst_30 = arith.constant 0.000000e+00 : f32
    %35 = vector.broadcast %cst_30 : f32 to vector<2x32xf32>
    %36 = arith.maximumf %34, %35 : vector<2x32xf32>
    %c0_31 = arith.constant 0 : index
    %c0_32 = arith.constant 0 : index
    %37 = vector.load %arg13[%c0_31, %c0_32] : memref<32x10xf32, #tpu.memory_space<vmem>>, vector<32x10xf32>
    %cst_33 = arith.constant dense<0.000000e+00> : vector<2x10xf32>
    %38 = tpu.matmul %36, %37, %cst_33 {dimension_numbers = #tpu.dot_dimension_numbers<[1], [0], [0], [1], [0, 0, 1, 1], [], []>} : vector<2x32xf32>, vector<32x10xf32>, vector<2x10xf32> -> vector<2x10xf32>
    %c0_34 = arith.constant 0 : index
    %c0_35 = arith.constant 0 : index
    %39 = vector.load %arg14[%c0_34, %c0_35] : memref<1x10xf32, #tpu.memory_space<vmem>>, vector<1x10xf32>
    %40 = vector.broadcast %39 : vector<1x10xf32> to vector<2x10xf32>
    %41 = arith.addf %38, %40 : vector<2x10xf32>
    %cst_36 = arith.constant dense<0xFF800000> : vector<2xf32>
    %42 = vector.multi_reduction <maximumf>, %41, %cst_36 [1] : vector<2x10xf32> to vector<2xf32>
    %43 = vector.shape_cast %42 : vector<2xf32> to vector<2x1xf32>
    %44 = vector.broadcast %43 : vector<2x1xf32> to vector<2x10xf32>
    %45 = arith.subf %41, %44 : vector<2x10xf32>
    %46 = math.exp %45 : vector<2x10xf32>
    %cst_37 = arith.constant dense<0.000000e+00> : vector<2xf32>
    %47 = vector.multi_reduction <add>, %46, %cst_37 [1] : vector<2x10xf32> to vector<2xf32>
    %48 = vector.shape_cast %47 : vector<2xf32> to vector<2x1xf32>
    %49 = math.log %48 : vector<2x1xf32>
    %50 = arith.addf %49, %43 : vector<2x1xf32>
    %51 = vector.broadcast %50 : vector<2x1xf32> to vector<2x10xf32>
    %52 = arith.subf %41, %51 : vector<2x10xf32>
    %c0_38 = arith.constant 0 : index
    %c0_39 = arith.constant 0 : index
    %53 = vector.load %arg15[%c0_38, %c0_39] : memref<2x10xf32, #tpu.memory_space<vmem>>, vector<2x10xf32>
    tpu.vector_store %arg15[%c0_38, %c0_39], %52 {strides = array<i32>} : memref<2x10xf32, #tpu.memory_space<vmem>>, vector<2x10xf32>,
    return
  }
  func.func @transform_0(%arg0: i32) -> (i32, i32) {
    %c0_i32 = arith.constant 0 : i32
    %c0_i32_0 = arith.constant 0 : i32
    %c0_i32_1 = arith.constant 0 : i32
    return %c0_i32, %c0_i32_0 : i32, i32
  }
  func.func @transform_1(%arg0: i32) -> (i32, i32) {
    %c0_i32 = arith.constant 0 : i32
    %c0_i32_0 = arith.constant 0 : i32
    %c0_i32_1 = arith.constant 0 : i32
    return %c0_i32, %c0_i32_0 : i32, i32
  }
  func.func @transform_2(%arg0: i32) -> (i32, i32) {
    %c0_i32 = arith.constant 0 : i32
    %c0_i32_0 = arith.constant 0 : i32
    %c0_i32_1 = arith.constant 0 : i32
    return %c0_i32, %c0_i32_0 : i32, i32
  }
  func.func @transform_3(%arg0: i32) -> (i32, i32) {
    %c0_i32 = arith.constant 0 : i32
    %c0_i32_0 = arith.constant 0 : i32
    %c0_i32_1 = arith.constant 0 : i32
    return %c0_i32, %c0_i32_0 : i32, i32
  }
  func.func @transform_4(%arg0: i32) -> (i32, i32) {
    %c0_i32 = arith.constant 0 : i32
    %c0_i32_0 = arith.constant 0 : i32
    %c0_i32_1 = arith.constant 0 : i32
    return %c0_i32, %c0_i32_0 : i32, i32
  }
  func.func @transform_5(%arg0: i32) -> (i32, i32) {
    %c0_i32 = arith.constant 0 : i32
    %c0_i32_0 = arith.constant 0 : i32
    %c0_i32_1 = arith.constant 0 : i32
    return %c0_i32, %c0_i32_0 : i32, i32
  }
  func.func @transform_6(%arg0: i32) -> (i32, i32) {
    %c0_i32 = arith.constant 0 : i32
    %c0_i32_0 = arith.constant 0 : i32
    %c0_i32_1 = arith.constant 0 : i32
    return %c0_i32, %c0_i32_0 : i32, i32
  }
  func.func @transform_7(%arg0: i32) -> (i32, i32) {
    %c0_i32 = arith.constant 0 : i32
    %c0_i32_0 = arith.constant 0 : i32
    %c0_i32_1 = arith.constant 0 : i32
    return %c0_i32, %c0_i32_0 : i32, i32
  }
  func.func @transform_8(%arg0: i32) -> (i32, i32) {
    %c0_i32 = arith.constant 0 : i32
    %c0_i32_0 = arith.constant 0 : i32
    %c0_i32_1 = arith.constant 0 : i32
    return %c0_i32, %c0_i32_0 : i32, i32
  }
  func.func @transform_9(%arg0: i32) -> (i32, i32) {
    %c0_i32 = arith.constant 0 : i32
    %c0_i32_0 = arith.constant 0 : i32
    %c0_i32_1 = arith.constant 0 : i32
    return %c0_i32, %c0_i32_0 : i32, i32
  }
  func.func @transform_10(%arg0: i32) -> (i32, i32) {
    %c0_i32 = arith.constant 0 : i32
    %c0_i32_0 = arith.constant 0 : i32
    %c0_i32_1 = arith.constant 0 : i32
    return %c0_i32, %c0_i32_0 : i32, i32
  }
  func.func @transform_11(%arg0: i32) -> (i32, i32) {
    %c0_i32 = arith.constant 0 : i32
    %c0_i32_0 = arith.constant 0 : i32
    %c0_i32_1 = arith.constant 0 : i32
    return %c0_i32, %c0_i32_0 : i32, i32
  }
  func.func @transform_12(%arg0: i32) -> (i32, i32) {
    %c0_i32 = arith.constant 0 : i32
    %c0_i32_0 = arith.constant 0 : i32
    %c0_i32_1 = arith.constant 0 : i32
    return %c0_i32, %c0_i32_0 : i32, i32
  }
  func.func @transform_13(%arg0: i32) -> (i32, i32) {
    %c0_i32 = arith.constant 0 : i32
    %c0_i32_0 = arith.constant 0 : i32
    %c0_i32_1 = arith.constant 0 : i32
    return %c0_i32, %c0_i32_0 : i32, i32
  }
  func.func @transform_14(%arg0: i32) -> (i32, i32) {
    %c0_i32 = arith.constant 0 : i32
    %c0_i32_0 = arith.constant 0 : i32
    %c0_i32_1 = arith.constant 0 : i32
    return %c0_i32, %c0_i32_0 : i32, i32
  }
}

</mosaic_0001>

<llo_original>
// kernel: tpu_custom_call.1
$region0: #{tpu_custom_call.1}
  #allocation0 [shape = 'u32[]', space=smem, size = 0x4, offset = 0x4, fixed_abs, tag = 'smem constant byte address 0x4 - core index']
  #allocation1 [shape = 'u32[144,128]{1,0:T(1,128)}', space=vmem, size = 0x12000, scoped, tag = 'internal scratch']
  %s0 = inlined_call_operand.vmem [shape: f32[128,8], index: 0, kind: input, shape index: {}]
  %s1 = inlined_call_operand.vmem [shape: f32[8,64], index: 1, kind: input, shape index: {}]
  %s2 = inlined_call_operand.vmem [shape: f32[1,64], index: 2, kind: input, shape index: {}]
  %s3 = inlined_call_operand.vmem [shape: f32[64,64], index: 3, kind: input, shape index: {}]
  %s4 = inlined_call_operand.vmem [shape: f32[1,64], index: 4, kind: input, shape index: {}]
  %s5 = inlined_call_operand.vmem [shape: f32[64,64], index: 5, kind: input, shape index: {}]
  %s6 = inlined_call_operand.vmem [shape: f32[1,64], index: 6, kind: input, shape index: {}]
  %s7 = inlined_call_operand.vmem [shape: f32[2,128], index: 7, kind: input, shape index: {}]
  %s8 = inlined_call_operand.vmem [shape: f32[1,64], index: 8, kind: input, shape index: {}]
  %s9 = inlined_call_operand.vmem [shape: f32[1,64], index: 9, kind: input, shape index: {}]
  %s10 = inlined_call_operand.vmem [shape: f32[64,32], index: 10, kind: input, shape index: {}]
  %s11 = inlined_call_operand.vmem [shape: f32[1,32], index: 11, kind: input, shape index: {}]
  %s12 = inlined_call_operand.vmem [shape: f32[32,10], index: 12, kind: input, shape index: {}]
  %s13 = inlined_call_operand.vmem [shape: f32[1,10], index: 13, kind: input, shape index: {}]
  %s14 = inlined_call_operand.hbm [shape: f32[2,10], index: 14, kind: output, shape index: {}]
  %s15 = sld [smem:[#allocation0]]
  $region66: #{tpu_custom_call.1} parent=0
    _
  %s17 = ssub.s32 1, %s15
  %s18 = scalar_select 0, %s17, %s15
  $region1: #{tpu_custom_call.1} parent=0
    #allocation2 [shape = 'u8[1024]{0}', space=vmem, size = 0x400, scoped, tag = 'output window, operand 0, single buffered']
    #allocation3 [shape = 's32[1]{0}', space=sflag, size = 0x4, scoped, tag = 'scoped memory for tpu_custom_call.1']
    %19 = vsyncpa [#allocation3], 0
    // Predicated region
    $region2: #{tpu_custom_call.1} parent=1 // pred_check
      _
    $region3: #{tpu_custom_call.1} parent=1 // pred_check_branch
      %21 = sbr.rel (0) target = $region5
    $region4: #{tpu_custom_call.1} parent=1 // pred_region
      _
    $region5: #{tpu_custom_call.1} parent=1 // pred_fallthru
      _
    // Predicated region
    $region6: #{tpu_custom_call.1} parent=1 // pred_check
      _
    $region7: #{tpu_custom_call.1} parent=1 // pred_check_branch
      %23 = sbr.rel (0) target = $region9
    $region8: #{tpu_custom_call.1} parent=1 // pred_region
      _
    $region9: #{tpu_custom_call.1} parent=1 // pred_fallthru
      _
    // Predicated region
    $region10: #{tpu_custom_call.1} parent=1 // pred_check
      _
    $region11: #{tpu_custom_call.1} parent=1 // pred_check_branch
      %25 = sbr.rel (0) target = $region13
    $region12: #{tpu_custom_call.1} parent=1 // pred_region
      _
    $region13: #{tpu_custom_call.1} parent=1 // pred_fallthru
      _
    // Predicated region
    $region14: #{tpu_custom_call.1} parent=1 // pred_check
      _
    $region15: #{tpu_custom_call.1} parent=1 // pred_check_branch
      %27 = sbr.rel (0) target = $region17
    $region16: #{tpu_custom_call.1} parent=1 // pred_region
      _
    $region17: #{tpu_custom_call.1} parent=1 // pred_fallthru
      _
    // Predicated region
    $region18: #{tpu_custom_call.1} parent=1 // pred_check
      _
    $region19: #{tpu_custom_call.1} parent=1 // pred_check_branch
      %29 = sbr.rel (0) target = $region21
    $region20: #{tpu_custom_call.1} parent=1 // pred_region
      _
    $region21: #{tpu_custom_call.1} parent=1 // pred_fallthru
      _
    // Predicated region
    $region22: #{tpu_custom_call.1} parent=1 // pred_check
      _
    $region23: #{tpu_custom_call.1} parent=1 // pred_check_branch
      %31 = sbr.rel (0) target = $region25
    $region24: #{tpu_custom_call.1} parent=1 // pred_region
      _
    $region25: #{tpu_custom_call.1} parent=1 // pred_fallthru
      _
    // Predicated region
    $region26: #{tpu_custom_call.1} parent=1 // pred_check
      _
    $region27: #{tpu_custom_call.1} parent=1 // pred_check_branch
      %33 = sbr.rel (0) target = $region29
    $region28: #{tpu_custom_call.1} parent=1 // pred_region
      _
    $region29: #{tpu_custom_call.1} parent=1 // pred_fallthru
      _
    // Predicated region
    $region30: #{tpu_custom_call.1} parent=1 // pred_check
      _
    $region31: #{tpu_custom_call.1} parent=1 // pred_check_branch
      %35 = sbr.rel (0) target = $region33
    $region32: #{tpu_custom_call.1} parent=1 // pred_region
      _
    $region33: #{tpu_custom_call.1} parent=1 // pred_fallthru
      _
    // Predicated region
    $region34: #{tpu_custom_call.1} parent=1 // pred_check
      _
    $region35: #{tpu_custom_call.1} parent=1 // pred_check_branch
      %37 = sbr.rel (0) target = $region37
    $region36: #{tpu_custom_call.1} parent=1 // pred_region
      _
    $region37: #{tpu_custom_call.1} parent=1 // pred_fallthru
      _
    // Predicated region
    $region38: #{tpu_custom_call.1} parent=1 // pred_check
      _
    $region39: #{tpu_custom_call.1} parent=1 // pred_check_branch
      %39 = sbr.rel (0) target = $region41
    $region40: #{tpu_custom_call.1} parent=1 // pred_region
      _
    $region41: #{tpu_custom_call.1} parent=1 // pred_fallthru
      _
    // Predicated region
    $region42: #{tpu_custom_call.1} parent=1 // pred_check
      _
    $region43: #{tpu_custom_call.1} parent=1 // pred_check_branch
      %41 = sbr.rel (0) target = $region45
    $region44: #{tpu_custom_call.1} parent=1 // pred_region
      _
    $region45: #{tpu_custom_call.1} parent=1 // pred_fallthru
      _
    // Predicated region
    $region46: #{tpu_custom_call.1} parent=1 // pred_check
      _
    $region47: #{tpu_custom_call.1} parent=1 // pred_check_branch
      %43 = sbr.rel (0) target = $region49
    $region48: #{tpu_custom_call.1} parent=1 // pred_region
      _
    $region49: #{tpu_custom_call.1} parent=1 // pred_fallthru
      _
    // Predicated region
    $region50: #{tpu_custom_call.1} parent=1 // pred_check
      _
    $region51: #{tpu_custom_call.1} parent=1 // pred_check_branch
      %45 = sbr.rel (0) target = $region53
    $region52: #{tpu_custom_call.1} parent=1 // pred_region
      _
    $region53: #{tpu_custom_call.1} parent=1 // pred_fallthru
      _
    // Predicated region
    $region54: #{tpu_custom_call.1} parent=1 // pred_check
      _
    $region55: #{tpu_custom_call.1} parent=1 // pred_check_branch
      %47 = sbr.rel (0) target = $region57
    $region56: #{tpu_custom_call.1} parent=1 // pred_region
      _
    $region57: #{tpu_custom_call.1} parent=1 // pred_fallthru
      _
    %v48 = vld [vmem:[%s0] sm:$0xff]
    %v49 = vld [vmem:[%s0 + $0x8] sm:$0xff]
    %v50 = vld [vmem:[%s0 + $0x10] sm:$0xff]
    %v51 = vld [vmem:[%s0 + $0x18] sm:$0xff]
    %v52 = vld [vmem:[%s0 + $0x20] sm:$0xff]
    %v53 = vld [vmem:[%s0 + $0x28] sm:$0xff]
    %v54 = vld [vmem:[%s0 + $0x30] sm:$0xff]
    %v55 = vld [vmem:[%s0 + $0x38] sm:$0xff]
    %v56 = vld [vmem:[%s0 + $0x40] sm:$0xff]
    %v57 = vld [vmem:[%s0 + $0x48] sm:$0xff]
    %v58 = vld [vmem:[%s0 + $0x50] sm:$0xff]
    %v59 = vld [vmem:[%s0 + $0x58] sm:$0xff]
    %v60 = vld [vmem:[%s0 + $0x60] sm:$0xff]
    %v61 = vld [vmem:[%s0 + $0x68] sm:$0xff]
    %v62 = vld [vmem:[%s0 + $0x70] sm:$0xff]
    %v63 = vld [vmem:[%s0 + $0x78] sm:$0xff]
    %v64 = vld [vmem:[%s1] sm:$0xff]
    %v65 = vld [vmem:[%s2] sm:$0x1]
    %v67 = vlaneseq
    %v68 = vshrl.u32 %v67, 7
    %v69 = vsub.s32 0, %v68
    %v70 = vrot.slane %v65, %v69
    %vm72 = vcmask 64512
    %v74 = vsel %vm72, %v48, 0
    %v77 = vsel %vm72, %v49, 0
    %v80 = vsel %vm72, %v50, 0
    %v83 = vsel %vm72, %v51, 0
    %v86 = vsel %vm72, %v52, 0
    %v89 = vsel %vm72, %v53, 0
    %v92 = vsel %vm72, %v54, 0
    %v95 = vsel %vm72, %v55, 0
    %v98 = vsel %vm72, %v56, 0
    %v101 = vsel %vm72, %v57, 0
    %v104 = vsel %vm72, %v58, 0
    %v107 = vsel %vm72, %v59, 0
    %v110 = vsel %vm72, %v60, 0
    %v113 = vsel %vm72, %v61, 0
    %v116 = vsel %vm72, %v62, 0
    %v119 = vsel %vm72, %v63, 0
    %121 = vmatprep.subr.mxu0 0.0
    %122 = vmatpush1.msra.mxu0 %v64
    %123 = vmatprep.subr.mxu0 0.0
    %124 = vmatpush1.msra.mxu0 0.0
    %125 = vmatprep.subr.mxu0 0.0
    %126 = vmatpush1.msra.mxu0 0.0
    %127 = vmatprep.subr.mxu0 0.0
    %128 = vmatpush1.msra.mxu0 0.0
    %129 = vmatprep.subr.mxu0 0.0
    %130 = vmatpush1.msra.mxu0 0.0
    %131 = vmatprep.subr.mxu0 0.0
    %132 = vmatpush1.msra.mxu0 0.0
    %133 = vmatprep.subr.mxu0 0.0
    %134 = vmatpush1.msra.mxu0 0.0
    %135 = vmatprep.subr.mxu0 0.0
    %136 = vmatpush1.msra.mxu0 0.0
    %137 = vmatprep.subr.mxu0 0.0
    %138 = vmatpush1.msra.mxu0 0.0
    %139 = vmatprep.subr.mxu0 0.0
    %140 = vmatpush1.msra.mxu0 0.0
    %141 = vmatprep.subr.mxu0 0.0
    %142 = vmatpush1.msra.mxu0 0.0
    %143 = vmatprep.subr.mxu0 0.0
    %144 = vmatpush1.msra.mxu0 0.0
    %145 = vmatprep.subr.mxu0 0.0
    %146 = vmatpush1.msra.mxu0 0.0
    %147 = vmatprep.subr.mxu0 0.0
    %148 = vmatpush1.msra.mxu0 0.0
    %149 = vmatprep.subr.mxu0 0.0
    %150 = vmatpush1.msra.mxu0 0.0
    %151 = vmatprep.subr.mxu0 0.0
    %152 = vmatpush1.msra.mxu0 0.0
    %153 = vmatprep.subr.mxu0 0.0
    %154 = vmatpush1.msra.mxu0 0.0
    %155 = vmatprep.subr.mxu0 0.0
    %156 = vmatpush1.msra.mxu0 0.0
    %157 = vmatprep.subr.mxu0 0.0
    %158 = vmatpush1.msra.mxu0 0.0
    %159 = vmatprep.subr.mxu0 0.0
    %160 = vmatpush1.msra.mxu0 0.0
    %161 = vmatprep.subr.mxu0 0.0
    %162 = vmatpush1.msra.mxu0 0.0
    %163 = vmatprep.subr.mxu0 0.0
    %164 = vmatpush1.msra.mxu0 0.0
    %165 = vmatprep.subr.mxu0 0.0
    %166 = vmatpush1.msra.mxu0 0.0
    %167 = vmatprep.subr.mxu0 0.0
    %168 = vmatpush1.msra.mxu0 0.0
    %169 = vmatprep.subr.mxu0 0.0
    %170 = vmatpush1.msra.mxu0 0.0
    %171 = vmatprep.subr.mxu0 0.0
    %172 = vmatpush1.msra.mxu0 0.0
    %173 = vmatprep.subr.mxu0 0.0
    %174 = vmatpush1.msra.mxu0 0.0
    %175 = vmatprep.subr.mxu0 0.0
    %176 = vmatpush1.msra.mxu0 0.0
    %177 = vmatprep.subr.mxu0 0.0
    %178 = vmatpush1.msra.mxu0 0.0
    %179 = vmatprep.subr.mxu0 0.0
    %180 = vmatpush1.msra.mxu0 0.0
    %181 = vmatprep.subr.mxu0 0.0
    %182 = vmatpush1.msra.mxu0 0.0
    %183 = vmatprep.subr.mxu0 0.0
    %184 = vmatpush1.msra.mxu0 0.0
    %185 = vmatprep.mubr.f32.mxu0 0.0
    %186 = vmatmul.mubr.f32.gmra.mrb[0].mxu0 %v74
    %v187 = vpop.f32.mrb[0].mxu0
    %v188 = vadd.f32 %v70, %v187
    %v189 = vpop.f32.mrb[0].mxu0
    %190 = vmatprep.mubr.f32.mxu0 0.0
    %191 = vmatmul.mubr.f32.gmra.mrb[0].mxu0 %v77
    %v192 = vpop.f32.mrb[0].mxu0
    %v193 = vadd.f32 %v70, %v192
    %v194 = vpop.f32.mrb[0].mxu0
    %195 = vmatprep.mubr.f32.mxu0 0.0
    %196 = vmatmul.mubr.f32.gmra.mrb[0].mxu0 %v80
    %v197 = vpop.f32.mrb[0].mxu0
    %v198 = vadd.f32 %v70, %v197
    %v199 = vpop.f32.mrb[0].mxu0
    %200 = vmatprep.mubr.f32.mxu0 0.0
    %201 = vmatmul.mubr.f32.gmra.mrb[0].mxu0 %v83
    %v202 = vpop.f32.mrb[0].mxu0
    %v203 = vadd.f32 %v70, %v202
    %v204 = vpop.f32.mrb[0].mxu0
    %205 = vmatprep.mubr.f32.mxu0 0.0
    %206 = vmatmul.mubr.f32.gmra.mrb[0].mxu0 %v86
    %v207 = vpop.f32.mrb[0].mxu0
    %v208 = vadd.f32 %v70, %v207
    %v209 = vpop.f32.mrb[0].mxu0
    %210 = vmatprep.mubr.f32.mxu0 0.0
    %211 = vmatmul.mubr.f32.gmra.mrb[0].mxu0 %v89
    %v212 = vpop.f32.mrb[0].mxu0
    %v213 = vadd.f32 %v70, %v212
    %v214 = vpop.f32.mrb[0].mxu0
    %215 = vmatprep.mubr.f32.mxu0 0.0
    %216 = vmatmul.mubr.f32.gmra.mrb[0].mxu0 %v92
    %v217 = vpop.f32.mrb[0].mxu0
    %v218 = vadd.f32 %v70, %v217
    %v219 = vpop.f32.mrb[0].mxu0
    %220 = vmatprep.mubr.f32.mxu0 0.0
    %221 = vmatmul.mubr.f32.gmra.mrb[0].mxu0 %v95
    %v222 = vpop.f32.mrb[0].mxu0
    %v223 = vadd.f32 %v70, %v222
    %v224 = vpop.f32.mrb[0].mxu0
    %225 = vmatprep.mubr.f32.mxu0 0.0
    %226 = vmatmul.mubr.f32.gmra.mrb[0].mxu0 %v98
    %v227 = vpop.f32.mrb[0].mxu0
    %v228 = vadd.f32 %v70, %v227
    %v229 = vpop.f32.mrb[0].mxu0
    %230 = vmatprep.mubr.f32.mxu0 0.0
    %231 = vmatmul.mubr.f32.gmra.mrb[0].mxu0 %v101
    %v232 = vpop.f32.mrb[0].mxu0
    %v233 = vadd.f32 %v70, %v232
    %v234 = vpop.f32.mrb[0].mxu0
    %235 = vmatprep.mubr.f32.mxu0 0.0
    %236 = vmatmul.mubr.f32.gmra.mrb[0].mxu0 %v104
    %v237 = vpop.f32.mrb[0].mxu0
    %v238 = vadd.f32 %v70, %v237
    %v239 = vpop.f32.mrb[0].mxu0
    %240 = vmatprep.mubr.f32.mxu0 0.0
    %241 = vmatmul.mubr.f32.gmra.mrb[0].mxu0 %v107
    %v242 = vpop.f32.mrb[0].mxu0
    %v243 = vadd.f32 %v70, %v242
    %v244 = vpop.f32.mrb[0].mxu0
    %245 = vmatprep.mubr.f32.mxu0 0.0
    %246 = vmatmul.mubr.f32.gmra.mrb[0].mxu0 %v110
    %v247 = vpop.f32.mrb[0].mxu0
    %v248 = vadd.f32 %v70, %v247
    %v249 = vpop.f32.mrb[0].mxu0
    %250 = vmatprep.mubr.f32.mxu0 0.0
    %251 = vmatmul.mubr.f32.gmra.mrb[0].mxu0 %v113
    %v252 = vpop.f32.mrb[0].mxu0
    %v253 = vadd.f32 %v70, %v252
    %v254 = vpop.f32.mrb[0].mxu0
    %255 = vmatprep.mubr.f32.mxu0 0.0
    %256 = vmatmul.mubr.f32.gmra.mrb[0].mxu0 %v116
    %v257 = vpop.f32.mrb[0].mxu0
    %v258 = vadd.f32 %v70, %v257
    %v259 = vpop.f32.mrb[0].mxu0
    %260 = vmatprep.mubr.f32.mxu0 0.0
    %261 = vmatmul.mubr.f32.gmra.mrb[0].mxu0 %v119
    %v262 = vpop.f32.mrb[0].mxu0
    %v263 = vadd.f32 %v70, %v262
    %v264 = vpop.f32.mrb[0].mxu0
    %265 = vdwg.mxu0
    %v266 = vmax.f32 %v188, 0.0
    %v267 = vmax.f32 %v193, 0.0
    %v268 = vmax.f32 %v198, 0.0
    %v269 = vmax.f32 %v203, 0.0
    %v270 = vmax.f32 %v208, 0.0
    %v271 = vmax.f32 %v213, 0.0
    %v272 = vmax.f32 %v218, 0.0
    %v273 = vmax.f32 %v223, 0.0
    %v274 = vmax.f32 %v228, 0.0
    %v275 = vmax.f32 %v233, 0.0
    %v276 = vmax.f32 %v238, 0.0
    %v277 = vmax.f32 %v243, 0.0
    %v278 = vmax.f32 %v248, 0.0
    %v279 = vmax.f32 %v253, 0.0
    %v280 = vmax.f32 %v258, 0.0
    %v281 = vmax.f32 %v263, 0.0
    %v282 = vld [vmem:[%s3] sm:$0xff]
    %v283 = vld [vmem:[%s3 + $0x8] sm:$0xff]
    %v284 = vld [vmem:[%s3 + $0x10] sm:$0xff]
    %v285 = vld [vmem:[%s3 + $0x18] sm:$0xff]
    %v286 = vld [vmem:[%s3 + $0x20] sm:$0xff]
    %v287 = vld [vmem:[%s3 + $0x28] sm:$0xff]
    %v288 = vld [vmem:[%s3 + $0x30] sm:$0xff]
    %v289 = vld [vmem:[%s3 + $0x38] sm:$0xff]
    %v290 = vld [vmem:[%s4] sm:$0x1]
    %v292 = vlaneseq
    %v293 = vshrl.u32 %v292, 7
    %v294 = vsub.s32 0, %v293
    %v295 = vrot.slane %v290, %v294
    %vm297 = vcmask 523264
    %v299 = vsel %vm297, %v266, 0
    %v302 = vsel %vm297, %v267, 0
    %v305 = vsel %vm297, %v268, 0
    %v308 = vsel %vm297, %v269, 0
    %v311 = vsel %vm297, %v270, 0
    %v314 = vsel %vm297, %v271, 0
    %v317 = vsel %vm297, %v272, 0
    %v320 = vsel %vm297, %v273, 0
    %v323 = vsel %vm297, %v274, 0
    %v326 = vsel %vm297, %v275, 0
    %v329 = vsel %vm297, %v276, 0
    %v332 = vsel %vm297, %v277, 0
    %v335 = vsel %vm297, %v278, 0
    %v338 = vsel %vm297, %v279, 0
    %v341 = vsel %vm297, %v280, 0
    %v344 = vsel %vm297, %v281, 0
    %346 = vmatprep.subr.mxu0 0.0
    %347 = vmatpush1.msra.mxu0 %v282
    %348 = vmatprep.subr.mxu0 0.0
    %349 = vmatpush1.msra.mxu0 %v283
    %350 = vmatprep.subr.mxu0 0.0
    %351 = vmatpush1.msra.mxu0 %v284
    %352 = vmatprep.subr.mxu0 0.0
    %353 = vmatpush1.msra.mxu0 %v285
    %354 = vmatprep.subr.mxu0 0.0
    %355 = vmatpush1.msra.mxu0 %v286
    %356 = vmatprep.subr.mxu0 0.0
    %357 = vmatpush1.msra.mxu0 %v287
    %358 = vmatprep.subr.mxu0 0.0
    %359 = vmatpush1.msra.mxu0 %v288
    %360 = vmatprep.subr.mxu0 0.0
    %361 = vmatpush1.msra.mxu0 %v289
    %362 = vmatprep.subr.mxu0 0.0
    %363 = vmatpush1.msra.mxu0 0.0
    %364 = vmatprep.subr.mxu0 0.0
    %365 = vmatpush1.msra.mxu0 0.0
    %366 = vmatprep.subr.mxu0 0.0
    %367 = vmatpush1.msra.mxu0 0.0
    %368 = vmatprep.subr.mxu0 0.0
    %369 = vmatpush1.msra.mxu0 0.0
    %370 = vmatprep.subr.mxu0 0.0
    %371 = vmatpush1.msra.mxu0 0.0
    %372 = vmatprep.subr.mxu0 0.0
    %373 = vmatpush1.msra.mxu0 0.0
    %374 = vmatprep.subr.mxu0 0.0
    %375 = vmatpush1.msra.mxu0 0.0
    %376 = vmatprep.subr.mxu0 0.0
    %377 = vmatpush1.msra.mxu0 0.0
    %378 = vmatprep.subr.mxu0 0.0
    %379 = vmatpush1.msra.mxu0 0.0
    %380 = vmatprep.subr.mxu0 0.0
    %381 = vmatpush1.msra.mxu0 0.0
    %382 = vmatprep.subr.mxu0 0.0
    %383 = vmatpush1.msra.mxu0 0.0
    %384 = vmatprep.subr.mxu0 0.0
    %385 = vmatpush1.msra.mxu0 0.0
    %386 = vmatprep.subr.mxu0 0.0
    %387 = vmatpush1.msra.mxu0 0.0
    %388 = vmatprep.subr.mxu0 0.0
    %389 = vmatpush1.msra.mxu0 0.0
    %390 = vmatprep.subr.mxu0 0.0
    %391 = vmatpush1.msra.mxu0 0.0
    %392 = vmatprep.subr.mxu0 0.0
    %393 = vmatpush1.msra.mxu0 0.0
    %394 = vmatprep.subr.mxu0 0.0
    %395 = vmatpush1.msra.mxu0 0.0
    %396 = vmatprep.subr.mxu0 0.0
    %397 = vmatpush1.msra.mxu0 0.0
    %398 = vmatprep.subr.mxu0 0.0
    %399 = vmatpush1.msra.mxu0 0.0
    %400 = vmatprep.subr.mxu0 0.0
    %401 = vmatpush1.msra.mxu0 0.0
    %402 = vmatprep.subr.mxu0 0.0
    %403 = vmatpush1.msra.mxu0 0.0
    %404 = vmatprep.subr.mxu0 0.0
    %405 = vmatpush1.msra.mxu0 0.0
    %406 = vmatprep.subr.mxu0 0.0
    %407 = vmatpush1.msra.mxu0 0.0
    %408 = vmatprep.subr.mxu0 0.0
    %409 = vmatpush1.msra.mxu0 0.0
    %410 = vmatprep.mubr.f32.mxu0 0.0
    %411 = vmatmul.mubr.f32.gmra.mrb[0].mxu0 %v299
    %v412 = vpop.f32.mrb[0].mxu0
    %v413 = vadd.f32 %v295, %v412
    %v414 = vpop.f32.mrb[0].mxu0
    %415 = vmatprep.mubr.f32.mxu0 0.0
    %416 = vmatmul.mubr.f32.gmra.mrb[0].mxu0 %v302
    %v417 = vpop.f32.mrb[0].mxu0
    %v418 = vadd.f32 %v295, %v417
    %v419 = vpop.f32.mrb[0].mxu0
    %420 = vmatprep.mubr.f32.mxu0 0.0
    %421 = vmatmul.mubr.f32.gmra.mrb[0].mxu0 %v305
    %v422 = vpop.f32.mrb[0].mxu0
    %v423 = vadd.f32 %v295, %v422
    %v424 = vpop.f32.mrb[0].mxu0
    %425 = vmatprep.mubr.f32.mxu0 0.0
    %426 = vmatmul.mubr.f32.gmra.mrb[0].mxu0 %v308
    %v427 = vpop.f32.mrb[0].mxu0
    %v428 = vadd.f32 %v295, %v427
    %v429 = vpop.f32.mrb[0].mxu0
    %430 = vmatprep.mubr.f32.mxu0 0.0
    %431 = vmatmul.mubr.f32.gmra.mrb[0].mxu0 %v311
    %v432 = vpop.f32.mrb[0].mxu0
    %v433 = vadd.f32 %v295, %v432
    %v434 = vpop.f32.mrb[0].mxu0
    %435 = vmatprep.mubr.f32.mxu0 0.0
    %436 = vmatmul.mubr.f32.gmra.mrb[0].mxu0 %v314
    %v437 = vpop.f32.mrb[0].mxu0
    %v438 = vadd.f32 %v295, %v437
    %v439 = vpop.f32.mrb[0].mxu0
    %440 = vmatprep.mubr.f32.mxu0 0.0
    %441 = vmatmul.mubr.f32.gmra.mrb[0].mxu0 %v317
    %v442 = vpop.f32.mrb[0].mxu0
    %v443 = vadd.f32 %v295, %v442
    %v444 = vpop.f32.mrb[0].mxu0
    %445 = vmatprep.mubr.f32.mxu0 0.0
    %446 = vmatmul.mubr.f32.gmra.mrb[0].mxu0 %v320
    %v447 = vpop.f32.mrb[0].mxu0
    %v448 = vadd.f32 %v295, %v447
    %v449 = vpop.f32.mrb[0].mxu0
    %450 = vmatprep.mubr.f32.mxu0 0.0
    %451 = vmatmul.mubr.f32.gmra.mrb[0].mxu0 %v323
    %v452 = vpop.f32.mrb[0].mxu0
    %v453 = vadd.f32 %v295, %v452
    %v454 = vpop.f32.mrb[0].mxu0
    %455 = vmatprep.mubr.f32.mxu0 0.0
    %456 = vmatmul.mubr.f32.gmra.mrb[0].mxu0 %v326
    %v457 = vpop.f32.mrb[0].mxu0
    %v458 = vadd.f32 %v295, %v457
    %v459 = vpop.f32.mrb[0].mxu0
    %460 = vmatprep.mubr.f32.mxu0 0.0
    %461 = vmatmul.mubr.f32.gmra.mrb[0].mxu0 %v329
    %v462 = vpop.f32.mrb[0].mxu0
    %v463 = vadd.f32 %v295, %v462
    %v464 = vpop.f32.mrb[0].mxu0
    %465 = vmatprep.mubr.f32.mxu0 0.0
    %466 = vmatmul.mubr.f32.gmra.mrb[0].mxu0 %v332
    %v467 = vpop.f32.mrb[0].mxu0
    %v468 = vadd.f32 %v295, %v467
    %v469 = vpop.f32.mrb[0].mxu0
    %470 = vmatprep.mubr.f32.mxu0 0.0
    %471 = vmatmul.mubr.f32.gmra.mrb[0].mxu0 %v335
    %v472 = vpop.f32.mrb[0].mxu0
    %v473 = vadd.f32 %v295, %v472
    %v474 = vpop.f32.mrb[0].mxu0
    %475 = vmatprep.mubr.f32.mxu0 0.0
    %476 = vmatmul.mubr.f32.gmra.mrb[0].mxu0 %v338
    %v477 = vpop.f32.mrb[0].mxu0
    %v478 = vadd.f32 %v295, %v477
    %v479 = vpop.f32.mrb[0].mxu0
    %480 = vmatprep.mubr.f32.mxu0 0.0
    %481 = vmatmul.mubr.f32.gmra.mrb[0].mxu0 %v341
    %v482 = vpop.f32.mrb[0].mxu0
    %v483 = vadd.f32 %v295, %v482
    %v484 = vpop.f32.mrb[0].mxu0
    %485 = vmatprep.mubr.f32.mxu0 0.0
    %486 = vmatmul.mubr.f32.gmra.mrb[0].mxu0 %v344
    %v487 = vpop.f32.mrb[0].mxu0
    %v488 = vadd.f32 %v295, %v487
    %v489 = vpop.f32.mrb[0].mxu0
    %490 = vdwg.mxu0
    %v491 = vmax.f32 %v413, 0.0
    %v492 = vmax.f32 %v418, 0.0
    %v493 = vmax.f32 %v423, 0.0
    %v494 = vmax.f32 %v428, 0.0
    %v495 = vmax.f32 %v433, 0.0
    %v496 = vmax.f32 %v438, 0.0
    %v497 = vmax.f32 %v443, 0.0
    %v498 = vmax.f32 %v448, 0.0
    %v499 = vmax.f32 %v453, 0.0
    %v500 = vmax.f32 %v458, 0.0
    %v501 = vmax.f32 %v463, 0.0
    %v502 = vmax.f32 %v468, 0.0
    %v503 = vmax.f32 %v473, 0.0
    %v504 = vmax.f32 %v478, 0.0
    %v505 = vmax.f32 %v483, 0.0
    %v506 = vmax.f32 %v488, 0.0
    %v507 = vld [vmem:[%s5] sm:$0xff]
    %v508 = vld [vmem:[%s5 + $0x8] sm:$0xff]
    %v509 = vld [vmem:[%s5 + $0x10] sm:$0xff]
    %v510 = vld [vmem:[%s5 + $0x18] sm:$0xff]
    %v511 = vld [vmem:[%s5 + $0x20] sm:$0xff]
    %v512 = vld [vmem:[%s5 + $0x28] sm:$0xff]
    %v513 = vld [vmem:[%s5 + $0x30] sm:$0xff]
    %v514 = vld [vmem:[%s5 + $0x38] sm:$0xff]
    %v515 = vld [vmem:[%s6] sm:$0x1]
    %v517 = vlaneseq
    %v518 = vshrl.u32 %v517, 7
    %v519 = vsub.s32 0, %v518
    %v520 = vrot.slane %v515, %v519
    %v523 = vsel %vm297, %v491, 0
    %v526 = vsel %vm297, %v492, 0
    %v529 = vsel %vm297, %v493, 0
    %v532 = vsel %vm297, %v494, 0
    %v535 = vsel %vm297, %v495, 0
    %v538 = vsel %vm297, %v496, 0
    %v541 = vsel %vm297, %v497, 0
    %v544 = vsel %vm297, %v498, 0
    %v547 = vsel %vm297, %v499, 0
    %v550 = vsel %vm297, %v500, 0
    %v553 = vsel %vm297, %v501, 0
    %v556 = vsel %vm297, %v502, 0
    %v559 = vsel %vm297, %v503, 0
    %v562 = vsel %vm297, %v504, 0
    %v565 = vsel %vm297, %v505, 0
    %v568 = vsel %vm297, %v506, 0
    %570 = vmatprep.subr.mxu0 0.0
    %571 = vmatpush1.msra.mxu0 %v507
    %572 = vmatprep.subr.mxu0 0.0
    %573 = vmatpush1.msra.mxu0 %v508
    %574 = vmatprep.subr.mxu0 0.0
    %575 = vmatpush1.msra.mxu0 %v509
    %576 = vmatprep.subr.mxu0 0.0
    %577 = vmatpush1.msra.mxu0 %v510
    %578 = vmatprep.subr.mxu0 0.0
    %579 = vmatpush1.msra.mxu0 %v511
    %580 = vmatprep.subr.mxu0 0.0
    %581 = vmatpush1.msra.mxu0 %v512
    %582 = vmatprep.subr.mxu0 0.0
    %583 = vmatpush1.msra.mxu0 %v513
    %584 = vmatprep.subr.mxu0 0.0
    %585 = vmatpush1.msra.mxu0 %v514
    %586 = vmatprep.subr.mxu0 0.0
    %587 = vmatpush1.msra.mxu0 0.0
    %588 = vmatprep.subr.mxu0 0.0
    %589 = vmatpush1.msra.mxu0 0.0
    %590 = vmatprep.subr.mxu0 0.0
    %591 = vmatpush1.msra.mxu0 0.0
    %592 = vmatprep.subr.mxu0 0.0
    %593 = vmatpush1.msra.mxu0 0.0
    %594 = vmatprep.subr.mxu0 0.0
    %595 = vmatpush1.msra.mxu0 0.0
    %596 = vmatprep.subr.mxu0 0.0
    %597 = vmatpush1.msra.mxu0 0.0
    %598 = vmatprep.subr.mxu0 0.0
    %599 = vmatpush1.msra.mxu0 0.0
    %600 = vmatprep.subr.mxu0 0.0
    %601 = vmatpush1.msra.mxu0 0.0
    %602 = vmatprep.subr.mxu0 0.0
    %603 = vmatpush1.msra.mxu0 0.0
    %604 = vmatprep.subr.mxu0 0.0
    %605 = vmatpush1.msra.mxu0 0.0
    %606 = vmatprep.subr.mxu0 0.0
    %607 = vmatpush1.msra.mxu0 0.0
    %608 = vmatprep.subr.mxu0 0.0
    %609 = vmatpush1.msra.mxu0 0.0
    %610 = vmatprep.subr.mxu0 0.0
    %611 = vmatpush1.msra.mxu0 0.0
    %612 = vmatprep.subr.mxu0 0.0
    %613 = vmatpush1.msra.mxu0 0.0
    %614 = vmatprep.subr.mxu0 0.0
    %615 = vmatpush1.msra.mxu0 0.0
    %616 = vmatprep.subr.mxu0 0.0
    %617 = vmatpush1.msra.mxu0 0.0
    %618 = vmatprep.subr.mxu0 0.0
    %619 = vmatpush1.msra.mxu0 0.0
    %620 = vmatprep.subr.mxu0 0.0
    %621 = vmatpush1.msra.mxu0 0.0
    %622 = vmatprep.subr.mxu0 0.0
    %623 = vmatpush1.msra.mxu0 0.0
    %624 = vmatprep.subr.mxu0 0.0
    %625 = vmatpush1.msra.mxu0 0.0
    %626 = vmatprep.subr.mxu0 0.0
    %627 = vmatpush1.msra.mxu0 0.0
    %628 = vmatprep.subr.mxu0 0.0
    %629 = vmatpush1.msra.mxu0 0.0
    %630 = vmatprep.subr.mxu0 0.0
    %631 = vmatpush1.msra.mxu0 0.0
    %632 = vmatprep.subr.mxu0 0.0
    %633 = vmatpush1.msra.mxu0 0.0
    %634 = vmatprep.mubr.f32.mxu0 0.0
    %635 = vmatmul.mubr.f32.gmra.mrb[0].mxu0 %v523
    %v636 = vpop.f32.mrb[0].mxu0
    %v637 = vadd.f32 %v520, %v636
    %v638 = vpop.f32.mrb[0].mxu0
    %639 = vmatprep.mubr.f32.mxu0 0.0
    %640 = vmatmul.mubr.f32.gmra.mrb[0].mxu0 %v526
    %v641 = vpop.f32.mrb[0].mxu0
    %v642 = vadd.f32 %v520, %v641
    %v643 = vpop.f32.mrb[0].mxu0
    %644 = vmatprep.mubr.f32.mxu0 0.0
    %645 = vmatmul.mubr.f32.gmra.mrb[0].mxu0 %v529
    %v646 = vpop.f32.mrb[0].mxu0
    %v647 = vadd.f32 %v520, %v646
    %v648 = vpop.f32.mrb[0].mxu0
    %649 = vmatprep.mubr.f32.mxu0 0.0
    %650 = vmatmul.mubr.f32.gmra.mrb[0].mxu0 %v532
    %v651 = vpop.f32.mrb[0].mxu0
    %v652 = vadd.f32 %v520, %v651
    %v653 = vpop.f32.mrb[0].mxu0
    %654 = vmatprep.mubr.f32.mxu0 0.0
    %655 = vmatmul.mubr.f32.gmra.mrb[0].mxu0 %v535
    %v656 = vpop.f32.mrb[0].mxu0
    %v657 = vadd.f32 %v520, %v656
    %v658 = vpop.f32.mrb[0].mxu0
    %659 = vmatprep.mubr.f32.mxu0 0.0
    %660 = vmatmul.mubr.f32.gmra.mrb[0].mxu0 %v538
    %v661 = vpop.f32.mrb[0].mxu0
    %v662 = vadd.f32 %v520, %v661
    %v663 = vpop.f32.mrb[0].mxu0
    %664 = vmatprep.mubr.f32.mxu0 0.0
    %665 = vmatmul.mubr.f32.gmra.mrb[0].mxu0 %v541
    %v666 = vpop.f32.mrb[0].mxu0
    %v667 = vadd.f32 %v520, %v666
    %v668 = vpop.f32.mrb[0].mxu0
    %669 = vmatprep.mubr.f32.mxu0 0.0
    %670 = vmatmul.mubr.f32.gmra.mrb[0].mxu0 %v544
    %v671 = vpop.f32.mrb[0].mxu0
    %v672 = vadd.f32 %v520, %v671
    %v673 = vpop.f32.mrb[0].mxu0
    %674 = vmatprep.mubr.f32.mxu0 0.0
    %675 = vmatmul.mubr.f32.gmra.mrb[0].mxu0 %v547
    %v676 = vpop.f32.mrb[0].mxu0
    %v677 = vadd.f32 %v520, %v676
    %v678 = vpop.f32.mrb[0].mxu0
    %679 = vmatprep.mubr.f32.mxu0 0.0
    %680 = vmatmul.mubr.f32.gmra.mrb[0].mxu0 %v550
    %v681 = vpop.f32.mrb[0].mxu0
    %v682 = vadd.f32 %v520, %v681
    %v683 = vpop.f32.mrb[0].mxu0
    %684 = vmatprep.mubr.f32.mxu0 0.0
    %685 = vmatmul.mubr.f32.gmra.mrb[0].mxu0 %v553
    %v686 = vpop.f32.mrb[0].mxu0
    %v687 = vadd.f32 %v520, %v686
    %v688 = vpop.f32.mrb[0].mxu0
    %689 = vmatprep.mubr.f32.mxu0 0.0
    %690 = vmatmul.mubr.f32.gmra.mrb[0].mxu0 %v556
    %v691 = vpop.f32.mrb[0].mxu0
    %v692 = vadd.f32 %v520, %v691
    %v693 = vpop.f32.mrb[0].mxu0
    %694 = vmatprep.mubr.f32.mxu0 0.0
    %695 = vmatmul.mubr.f32.gmra.mrb[0].mxu0 %v559
    %v696 = vpop.f32.mrb[0].mxu0
    %v697 = vadd.f32 %v520, %v696
    %v698 = vpop.f32.mrb[0].mxu0
    %699 = vmatprep.mubr.f32.mxu0 0.0
    %700 = vmatmul.mubr.f32.gmra.mrb[0].mxu0 %v562
    %v701 = vpop.f32.mrb[0].mxu0
    %v702 = vadd.f32 %v520, %v701
    %v703 = vpop.f32.mrb[0].mxu0
    %704 = vmatprep.mubr.f32.mxu0 0.0
    %705 = vmatmul.mubr.f32.gmra.mrb[0].mxu0 %v565
    %v706 = vpop.f32.mrb[0].mxu0
    %v707 = vadd.f32 %v520, %v706
    %v708 = vpop.f32.mrb[0].mxu0
    %709 = vmatprep.mubr.f32.mxu0 0.0
    %710 = vmatmul.mubr.f32.gmra.mrb[0].mxu0 %v568
    %v711 = vpop.f32.mrb[0].mxu0
    %v712 = vadd.f32 %v520, %v711
    %v713 = vpop.f32.mrb[0].mxu0
    %714 = vdwg.mxu0
    %v715 = vmax.f32 %v637, 0.0
    %v716 = vmax.f32 %v642, 0.0
    %v717 = vmax.f32 %v647, 0.0
    %v718 = vmax.f32 %v652, 0.0
    %v719 = vmax.f32 %v657, 0.0
    %v720 = vmax.f32 %v662, 0.0
    %v721 = vmax.f32 %v667, 0.0
    %v722 = vmax.f32 %v672, 0.0
    %v723 = vmax.f32 %v677, 0.0
    %v724 = vmax.f32 %v682, 0.0
    %v725 = vmax.f32 %v687, 0.0
    %v726 = vmax.f32 %v692, 0.0
    %v727 = vmax.f32 %v697, 0.0
    %v728 = vmax.f32 %v702, 0.0
    %v729 = vmax.f32 %v707, 0.0
    %v730 = vmax.f32 %v712, 0.0
    %v731 = vld [vmem:[%s7] sm:$0x3]
    %732 = vmatprep.subr.mxu0 0.0
    %733 = vmatpush1.msra.mxu0 %v715
    %734 = vmatprep.subr.mxu0 0.0
    %735 = vmatpush1.msra.mxu0 %v716
    %736 = vmatprep.subr.mxu0 0.0
    %737 = vmatpush1.msra.mxu0 %v717
    %738 = vmatprep.subr.mxu0 0.0
    %739 = vmatpush1.msra.mxu0 %v718
    %740 = vmatprep.subr.mxu0 0.0
    %741 = vmatpush1.msra.mxu0 %v719
    %742 = vmatprep.subr.mxu0 0.0
    %743 = vmatpush1.msra.mxu0 %v720
    %744 = vmatprep.subr.mxu0 0.0
    %745 = vmatpush1.msra.mxu0 %v721
    %746 = vmatprep.subr.mxu0 0.0
    %747 = vmatpush1.msra.mxu0 %v722
    %748 = vmatprep.subr.mxu0 0.0
    %749 = vmatpush1.msra.mxu0 %v723
    %750 = vmatprep.subr.mxu0 0.0
    %751 = vmatpush1.msra.mxu0 %v724
    %752 = vmatprep.subr.mxu0 0.0
    %753 = vmatpush1.msra.mxu0 %v725
    %754 = vmatprep.subr.mxu0 0.0
    %755 = vmatpush1.msra.mxu0 %v726
    %756 = vmatprep.subr.mxu0 0.0
    %757 = vmatpush1.msra.mxu0 %v727
    %758 = vmatprep.subr.mxu0 0.0
    %759 = vmatpush1.msra.mxu0 %v728
    %760 = vmatprep.subr.mxu0 0.0
    %761 = vmatpush1.msra.mxu0 %v729
    %762 = vmatprep.subr.mxu0 0.0
    %763 = vmatpush1.msra.mxu0 %v730
    %764 = vmatprep.subr.mxu0 0.0
    %765 = vmatpush1.msra.mxu0 0.0
    %766 = vmatprep.subr.mxu0 0.0
    %767 = vmatpush1.msra.mxu0 0.0
    %768 = vmatprep.subr.mxu0 0.0
    %769 = vmatpush1.msra.mxu0 0.0
    %770 = vmatprep.subr.mxu0 0.0
    %771 = vmatpush1.msra.mxu0 0.0
    %772 = vmatprep.subr.mxu0 0.0
    %773 = vmatpush1.msra.mxu0 0.0
    %774 = vmatprep.subr.mxu0 0.0
    %775 = vmatpush1.msra.mxu0 0.0
    %776 = vmatprep.subr.mxu0 0.0
    %777 = vmatpush1.msra.mxu0 0.0
    %778 = vmatprep.subr.mxu0 0.0
    %779 = vmatpush1.msra.mxu0 0.0
    %780 = vmatprep.subr.mxu0 0.0
    %781 = vmatpush1.msra.mxu0 0.0
    %782 = vmatprep.subr.mxu0 0.0
    %783 = vmatpush1.msra.mxu0 0.0
    %784 = vmatprep.subr.mxu0 0.0
    %785 = vmatpush1.msra.mxu0 0.0
    %786 = vmatprep.subr.mxu0 0.0
    %787 = vmatpush1.msra.mxu0 0.0
    %788 = vmatprep.subr.mxu0 0.0
    %789 = vmatpush1.msra.mxu0 0.0
    %790 = vmatprep.subr.mxu0 0.0
    %791 = vmatpush1.msra.mxu0 0.0
    %792 = vmatprep.subr.mxu0 0.0
    %793 = vmatpush1.msra.mxu0 0.0
    %794 = vmatprep.subr.mxu0 0.0
    %795 = vmatpush1.msra.mxu0 0.0
    %796 = vmatprep.mubr.f32.mxu0 0.0
    %797 = vmatmul.mubr.f32.gmra.mrb[0].mxu0 %v731
    %v798 = vpop.f32.mrb[0].mxu0
    %v799 = vadd.f32 0.0, %v798
    %v800 = vpop.f32.mrb[0].mxu0
    %801 = vdwg.mxu0
    %v802 = vld [vmem:[%s8] sm:$0x1]
    %v804 = vlaneseq
    %v805 = vshrl.u32 %v804, 7
    %v806 = vsub.s32 0, %v805
    %v807 = vrot.slane %v802, %v806
    %v809 = vmul.f32 %v799, %v807
    %v810 = vld [vmem:[%s9] sm:$0x1]
    %v812 = vlaneseq
    %v813 = vshrl.u32 %v812, 7
    %v814 = vsub.s32 0, %v813
    %v815 = vrot.slane %v810, %v814
    %v817 = vadd.f32 %v809, %v815
    %v818 = vld [vmem:[%s10] sm:$0xff]
    %v819 = vld [vmem:[%s10 + $0x8] sm:$0xff]
    %v820 = vld [vmem:[%s10 + $0x10] sm:$0xff]
    %v821 = vld [vmem:[%s10 + $0x18] sm:$0xff]
    %v822 = vld [vmem:[%s10 + $0x20] sm:$0xff]
    %v823 = vld [vmem:[%s10 + $0x28] sm:$0xff]
    %v824 = vld [vmem:[%s10 + $0x30] sm:$0xff]
    %v825 = vld [vmem:[%s10 + $0x38] sm:$0xff]
    %v826 = vld [vmem:[%s11] sm:$0x1]
    %v828 = vlaneseq
    %v829 = vshrl.u32 %v828, 7
    %v830 = vsub.s32 0, %v829
    %v831 = vrot.slane %v826, %v830
    %v834 = vsel %vm297, %v817, 0
    %836 = vmatprep.subr.mxu0 0.0
    %837 = vmatpush1.msra.mxu0 %v818
    %838 = vmatprep.subr.mxu0 0.0
    %839 = vmatpush1.msra.mxu0 %v819
    %840 = vmatprep.subr.mxu0 0.0
    %841 = vmatpush1.msra.mxu0 %v820
    %842 = vmatprep.subr.mxu0 0.0
    %843 = vmatpush1.msra.mxu0 %v821
    %844 = vmatprep.subr.mxu0 0.0
    %845 = vmatpush1.msra.mxu0 %v822
    %846 = vmatprep.subr.mxu0 0.0
    %847 = vmatpush1.msra.mxu0 %v823
    %848 = vmatprep.subr.mxu0 0.0
    %849 = vmatpush1.msra.mxu0 %v824
    %850 = vmatprep.subr.mxu0 0.0
    %851 = vmatpush1.msra.mxu0 %v825
    %852 = vmatprep.subr.mxu0 0.0
    %853 = vmatpush1.msra.mxu0 0.0
    %854 = vmatprep.subr.mxu0 0.0
    %855 = vmatpush1.msra.mxu0 0.0
    %856 = vmatprep.subr.mxu0 0.0
    %857 = vmatpush1.msra.mxu0 0.0
    %858 = vmatprep.subr.mxu0 0.0
    %859 = vmatpush1.msra.mxu0 0.0
    %860 = vmatprep.subr.mxu0 0.0
    %861 = vmatpush1.msra.mxu0 0.0
    %862 = vmatprep.subr.mxu0 0.0
    %863 = vmatpush1.msra.mxu0 0.0
    %864 = vmatprep.subr.mxu0 0.0
    %865 = vmatpush1.msra.mxu0 0.0
    %866 = vmatprep.subr.mxu0 0.0
    %867 = vmatpush1.msra.mxu0 0.0
    %868 = vmatprep.subr.mxu0 0.0
    %869 = vmatpush1.msra.mxu0 0.0
    %870 = vmatprep.subr.mxu0 0.0
    %871 = vmatpush1.msra.mxu0 0.0
    %872 = vmatprep.subr.mxu0 0.0
    %873 = vmatpush1.msra.mxu0 0.0
    %874 = vmatprep.subr.mxu0 0.0
    %875 = vmatpush1.msra.mxu0 0.0
    %876 = vmatprep.subr.mxu0 0.0
    %877 = vmatpush1.msra.mxu0 0.0
    %878 = vmatprep.subr.mxu0 0.0
    %879 = vmatpush1.msra.mxu0 0.0
    %880 = vmatprep.subr.mxu0 0.0
    %881 = vmatpush1.msra.mxu0 0.0
    %882 = vmatprep.subr.mxu0 0.0
    %883 = vmatpush1.msra.mxu0 0.0
    %884 = vmatprep.subr.mxu0 0.0
    %885 = vmatpush1.msra.mxu0 0.0
    %886 = vmatprep.subr.mxu0 0.0
    %887 = vmatpush1.msra.mxu0 0.0
    %888 = vmatprep.subr.mxu0 0.0
    %889 = vmatpush1.msra.mxu0 0.0
    %890 = vmatprep.subr.mxu0 0.0
    %891 = vmatpush1.msra.mxu0 0.0
    %892 = vmatprep.subr.mxu0 0.0
    %893 = vmatpush1.msra.mxu0 0.0
    %894 = vmatprep.subr.mxu0 0.0
    %895 = vmatpush1.msra.mxu0 0.0
    %896 = vmatprep.subr.mxu0 0.0
    %897 = vmatpush1.msra.mxu0 0.0
    %898 = vmatprep.subr.mxu0 0.0
    %899 = vmatpush1.msra.mxu0 0.0
    %900 = vmatprep.mubr.f32.mxu0 0.0
    %901 = vmatmul.mubr.f32.gmra.mrb[0].mxu0 %v834
    %v902 = vpop.f32.mrb[0].mxu0
    %v903 = vadd.f32 %v831, %v902
    %v904 = vpop.f32.mrb[0].mxu0
    %905 = vdwg.mxu0
    %v906 = vmax.f32 %v903, 0.0
    %v907 = vld [vmem:[%s12] sm:$0xff]
    %v908 = vld [vmem:[%s12 + $0x8] sm:$0xff]
    %v909 = vld [vmem:[%s12 + $0x10] sm:$0xff]
    %v910 = vld [vmem:[%s12 + $0x18] sm:$0xff]
    %v911 = vld [vmem:[%s13] sm:$0x1]
    %v913 = vlaneseq
    %v914 = vshrl.u32 %v913, 7
    %v915 = vsub.s32 0, %v914
    %v916 = vrot.slane %v911, %v915
    %vm918 = vcmask 261120
    %v920 = vsel %vm918, %v906, 0
    %922 = vmatprep.subr.mxu0 0.0
    %923 = vmatpush1.msra.mxu0 %v907
    %924 = vmatprep.subr.mxu0 0.0
    %925 = vmatpush1.msra.mxu0 %v908
    %926 = vmatprep.subr.mxu0 0.0
    %927 = vmatpush1.msra.mxu0 %v909
    %928 = vmatprep.subr.mxu0 0.0
    %929 = vmatpush1.msra.mxu0 %v910
    %930 = vmatprep.subr.mxu0 0.0
    %931 = vmatpush1.msra.mxu0 0.0
    %932 = vmatprep.subr.mxu0 0.0
    %933 = vmatpush1.msra.mxu0 0.0
    %934 = vmatprep.subr.mxu0 0.0
    %935 = vmatpush1.msra.mxu0 0.0
    %936 = vmatprep.subr.mxu0 0.0
    %937 = vmatpush1.msra.mxu0 0.0
    %938 = vmatprep.subr.mxu0 0.0
    %939 = vmatpush1.msra.mxu0 0.0
    %940 = vmatprep.subr.mxu0 0.0
    %941 = vmatpush1.msra.mxu0 0.0
    %942 = vmatprep.subr.mxu0 0.0
    %943 = vmatpush1.msra.mxu0 0.0
    %944 = vmatprep.subr.mxu0 0.0
    %945 = vmatpush1.msra.mxu0 0.0
    %946 = vmatprep.subr.mxu0 0.0
    %947 = vmatpush1.msra.mxu0 0.0
    %948 = vmatprep.subr.mxu0 0.0
    %949 = vmatpush1.msra.mxu0 0.0
    %950 = vmatprep.subr.mxu0 0.0
    %951 = vmatpush1.msra.mxu0 0.0
    %952 = vmatprep.subr.mxu0 0.0
    %953 = vmatpush1.msra.mxu0 0.0
    %954 = vmatprep.subr.mxu0 0.0
    %955 = vmatpush1.msra.mxu0 0.0
    %956 = vmatprep.subr.mxu0 0.0
    %957 = vmatpush1.msra.mxu0 0.0
    %958 = vmatprep.subr.mxu0 0.0
    %959 = vmatpush1.msra.mxu0 0.0
    %960 = vmatprep.subr.mxu0 0.0
    %961 = vmatpush1.msra.mxu0 0.0
    %962 = vmatprep.subr.mxu0 0.0
    %963 = vmatpush1.msra.mxu0 0.0
    %964 = vmatprep.subr.mxu0 0.0
    %965 = vmatpush1.msra.mxu0 0.0
    %966 = vmatprep.subr.mxu0 0.0
    %967 = vmatpush1.msra.mxu0 0.0
    %968 = vmatprep.subr.mxu0 0.0
    %969 = vmatpush1.msra.mxu0 0.0
    %970 = vmatprep.subr.mxu0 0.0
    %971 = vmatpush1.msra.mxu0 0.0
    %972 = vmatprep.subr.mxu0 0.0
    %973 = vmatpush1.msra.mxu0 0.0
    %974 = vmatprep.subr.mxu0 0.0
    %975 = vmatpush1.msra.mxu0 0.0
    %976 = vmatprep.subr.mxu0 0.0
    %977 = vmatpush1.msra.mxu0 0.0
    %978 = vmatprep.subr.mxu0 0.0
    %979 = vmatpush1.msra.mxu0 0.0
    %980 = vmatprep.subr.mxu0 0.0
    %981 = vmatpush1.msra.mxu0 0.0
    %982 = vmatprep.subr.mxu0 0.0
    %983 = vmatpush1.msra.mxu0 0.0
    %984 = vmatprep.subr.mxu0 0.0
    %985 = vmatpush1.msra.mxu0 0.0
    %986 = vmatprep.mubr.f32.mxu0 0.0
    %987 = vmatmul.mubr.f32.gmra.mrb[0].mxu0 %v920
    %v988 = vpop.f32.mrb[0].mxu0
    %v989 = vadd.f32 %v916, %v988
    %v990 = vpop.f32.mrb[0].mxu0
    %991 = vdwg.mxu0
    %vm992 = vcmask 74752
    %v993 = vsel %vm992, %v989, -inf
    %994 = vmax.xlane.f32.xlu0 %v993
    %v995 = vpop.xlane.xlu0 %994
    %v996 = vsub.f32 %v989, %v995
    %v997 = vmul.f32 %v996, 1.442695
    %v998 = vpow.pop %v997
    %v999 = vsel %vm992, %v998, 0.0
    %1000 = vadd.xlane.f32.xlu0 %v999
    %v1001 = vpop.xlane.xlu0 %1000
    %v1002 = vlog2.pop %v1001
    %v1003 = vmul.f32 %v1002, 0.6931472
    %v1004 = vadd.f32 %v1003, %v995
    %v1005 = vsub.f32 %v989, %v1004
    %1006 = vst.msk [vmem:[#allocation2] sm:$0x3] %vm992, %v1005
    // Predicated region
    $region58: #{tpu_custom_call.1} parent=1 // pred_check
      _
    $region59: #{tpu_custom_call.1} parent=1 // pred_check_branch
      %1008 = sbr.rel (0) target = $region61
    $region60: #{tpu_custom_call.1} parent=1 // pred_region
      %s1010 = ssub.s32 32, 32
      %1011 = vsyncadd [#allocation3], %s1010
      %s1013 = sshll.u32 [#allocation2], 4
      %s1014 = int_to_ptr.vmem [resolvable:$true] %s1013
      %1016 = dma.vmem_to_hbm [thread:$0]  %s1014, 32, %s14, [#allocation3]
    $region61: #{tpu_custom_call.1} parent=1 // pred_fallthru
      _
    // Predicated region
    $region62: #{tpu_custom_call.1} parent=1 // pred_check
      _
    $region63: #{tpu_custom_call.1} parent=1 // pred_check_branch
      %1018 = sbr.rel (0) target = $region65
    $region64: #{tpu_custom_call.1} parent=1 // pred_region
      %1019 = dma.done [#allocation3], 32
    $region65: #{tpu_custom_call.1} parent=1 // pred_fallthru
      _
    %1020 = vsyncpa [#allocation3], 1

</llo_original>
